<compile_context>
chip_gen: v5e
topology: v5e:2x2
jax: 0.10.0
libtpu: 0.0.40
codegen_flags: <defaults>
</compile_context>

<pallas_src>
import functools

import jax
import jax.numpy as jnp
from jax.experimental import pallas as pl
from jax.experimental.pallas import tpu as pltpu


def mnist_kernel(x_ref, w1_ref, b1_ref, w2_ref, b2_ref, out_ref):
    # Activations arrive as raw f32 straight from HBM; cast to bf16 here
    # (VPU, hidden under the input DMA) instead of a separate XLA pass.
    x = x_ref[...].astype(jnp.bfloat16)                       # (TB, 784) bf16

    # fc1 (bf16 MXU matmul, f32 accumulate) + bias + relu in f32.
    h = jnp.dot(x, w1_ref[...], preferred_element_type=jnp.float32)  # (TB, 128)
    h = jnp.maximum(h + b1_ref[...], 0.0)

    # dropout1 (p=0.25) is identity at inference time.
    # TODO(synk): training-mode Dropout2d (stochastic channel masking) not implemented.

    # fc2 (bf16 MXU matmul, f32 accumulate) + bias.
    logits = jnp.dot(h.astype(jnp.bfloat16), w2_ref[...],
                     preferred_element_type=jnp.float32)      # (TB, 10)
    logits = logits + b2_ref[...]

    # log_softmax over dim=1 (last axis), max-shifted for stability.
    m = jnp.max(logits, axis=-1, keepdims=True)
    shifted = logits - m
    lse = jnp.log(jnp.sum(jnp.exp(shifted), axis=-1, keepdims=True))
    out_ref[...] = shifted - lse


def prepare_params(w1, b1, w2, b2):
    """One-time parameter prep: transpose to (in, out), zero-pad the hidden
    dim to a full 128-lane vreg, and cast matmul operands to bf16."""
    hidden, in_dim = w1.shape          # (64, 784)
    out_dim = w2.shape[0]              # 10
    h_pad = max(128, ((hidden + 127) // 128) * 128)

    w1_t = jnp.zeros((in_dim, h_pad), jnp.bfloat16)
    w1_t = w1_t.at[:, :hidden].set(w1.T.astype(jnp.bfloat16))         # (784, 128)
    b1_r = jnp.zeros((1, h_pad), jnp.float32).at[:, :hidden].set(b1)  # (1, 128)
    w2_t = jnp.zeros((h_pad, out_dim), jnp.bfloat16)
    w2_t = w2_t.at[:hidden, :].set(w2.T.astype(jnp.bfloat16))         # (128, 10)
    b2_r = b2.reshape(1, out_dim).astype(jnp.float32)                 # (1, 10)
    return w1_t, b1_r, w2_t, b2_r


def _pick_batch_tile(B, block_b):
    """Batch-tile heuristic (B, block_b are static Python ints)."""
    if B <= 256:
        # Tiny batch: one tile, rounded to a multiple of 16 so the bf16 hidden
        # (2 rows per sublane) avoids masked sub-tile relayouts.
        return max(16, ((B + 15) // 16) * 16)
    # Moderate/large batch: at least ~4 grid steps (pipeline fill + both v7x
    # TensorCores), tiles a multiple of 128 rows (full MXU M dim), capped at
    # block_b rows to stay well inside VMEM on every generation.
    return min(block_b, max(128, ((B // 4) // 128) * 128))


@functools.partial(jax.jit, static_argnames=("block_b",))
def simple_mnist_net_forward(x_nchw, w1_t, b1_r, w2_t, b2_r, *, block_b=2048):
    """x_nchw: (B, 1, 28, 28) float32. Params from prepare_params().
    Returns (B, out_dim) float32 log-probabilities."""
    B = x_nchw.shape[0]
    in_dim = w1_t.shape[0]
    h_pad = w1_t.shape[1]
    out_dim = w2_t.shape[1]

    # flatten(x, 1); stays f32 — the bf16 cast happens inside the kernel.
    x = x_nchw.reshape(B, in_dim)                              # (B, 784)

    TB = _pick_batch_tile(B, block_b)
    grid = (pl.cdiv(B, TB),)   # ragged last block handled by Pallas masking

    cost = pl.CostEstimate(
        flops=2 * B * in_dim * h_pad + 2 * B * h_pad * out_dim,
        transcendentals=B * (out_dim + 1),                     # exp per logit + log per row
        bytes_accessed=(B * in_dim * 4 + B * out_dim * 4
                        + w1_t.size * 2 + w2_t.size * 2
                        + b1_r.size * 4 + b2_r.size * 4),
    )

    out = pl.pallas_call(
        mnist_kernel,
        out_shape=jax.ShapeDtypeStruct((B, out_dim), jnp.float32),
        grid=grid,
        in_specs=[
            pl.BlockSpec((TB, in_dim), lambda i: (i, 0)),      # activations: tiled over batch
            pl.BlockSpec(w1_t.shape, lambda i: (0, 0)),        # weights stay resident in VMEM
            pl.BlockSpec(b1_r.shape, lambda i: (0, 0)),
            pl.BlockSpec(w2_t.shape, lambda i: (0, 0)),
            pl.BlockSpec(b2_r.shape, lambda i: (0, 0)),
        ],
        out_specs=pl.BlockSpec((TB, out_dim), lambda i: (i, 0)),
        compiler_params=pltpu.CompilerParams(
            dimension_semantics=("parallel",),                 # megacore sharding on v7x
            vmem_limit_bytes=32 * 1024 * 1024,
        ),
        cost_estimate=cost,
    )(x, w1_t, b1_r, w2_t, b2_r)

    return out


def init_params(key, output_dim=10):
    """Deterministic init mimicking PyTorch Linear default (uniform +-1/sqrt(in))."""
    k1, k2, k3, k4 = jax.random.split(key, 4)
    bound1 = 1.0 / jnp.sqrt(784.0)
    bound2 = 1.0 / jnp.sqrt(64.0)
    w1 = jax.random.uniform(k1, (64, 784), jnp.float32, -bound1, bound1)
    b1 = jax.random.uniform(k2, (64,), jnp.float32, -bound1, bound1)
    w2 = jax.random.uniform(k3, (output_dim, 64), jnp.float32, -bound2, bound2)
    b2 = jax.random.uniform(k4, (output_dim,), jnp.float32, -bound2, bound2)
    return w1, b1, w2, b2


if __name__ == "__main__":
    key = jax.random.PRNGKey(0)
    k_x, k_p = jax.random.split(key)

    B = 2
    x = jax.random.normal(k_x, (B, 1, 28, 28), jnp.float32)   # NCHW, MNIST-shaped
    w1, b1, w2, b2 = init_params(k_p, output_dim=10)

    # One-time param prep (transpose / pad / cast) hoisted out of the call path.
    w1_t, b1_r, w2_t, b2_r = prepare_params(w1, b1, w2, b2)

    out = simple_mnist_net_forward(x, w1_t, b1_r, w2_t, b2_r)
    out = jax.block_until_ready(out)

    # Sanity check against a pure-JAX reference mirroring the kernel's
    # mixed-precision path (bf16 MXU operands, f32 accumulation).
    xb = x.reshape(B, -1).astype(jnp.bfloat16)
    h_ref = jnp.maximum(
        jnp.dot(xb, w1_t, preferred_element_type=jnp.float32) + b1_r, 0.0)
    logits_ref = jnp.dot(h_ref.astype(jnp.bfloat16), w2_t,
                         preferred_element_type=jnp.float32) + b2_r
    ref = logits_ref - jax.scipy.special.logsumexp(logits_ref, axis=1, keepdims=True)

    assert out.shape == (B, 10)
    assert bool(jnp.all(jnp.isfinite(out))), "non-finite output"
    assert jnp.allclose(out, ref, atol=2e-3, rtol=2e-3), "mismatch vs reference"

    print("KERNEL_OK")
</pallas_src>

<mosaic_0001>
module attributes {stable_mosaic.version = 11 : i64} {
  func.func @mnist_kernel(%arg0: i32, %arg1: memref<16x784xf32, #tpu.memory_space<vmem>>, %arg2: memref<784x128xbf16, #tpu.memory_space<vmem>>, %arg3: memref<1x128xf32, #tpu.memory_space<vmem>>, %arg4: memref<128x10xbf16, #tpu.memory_space<vmem>>, %arg5: memref<1x10xf32, #tpu.memory_space<vmem>>, %arg6: memref<16x10xf32, #tpu.memory_space<vmem>>) attributes {dimension_semantics = [#tpu.dimension_semantics<parallel>], iteration_bounds = array<i64: 1>, scalar_prefetch = 0 : i64, scratch_operands = 0 : i64, tpu.core_type = #tpu.core_type<tc>, window_params = [{transform_indices = @transform_0, window_bounds = array<i64: 16, 784>}, {pipeline_mode = #tpu.pipeline_mode<synchronous>, transform_indices = @transform_1, window_bounds = array<i64: 784, 128>}, {pipeline_mode = #tpu.pipeline_mode<synchronous>, transform_indices = @transform_2, window_bounds = array<i64: 1, 128>}, {pipeline_mode = #tpu.pipeline_mode<synchronous>, transform_indices = @transform_3, window_bounds = array<i64: 128, 10>}, {pipeline_mode = #tpu.pipeline_mode<synchronous>, transform_indices = @transform_4, window_bounds = array<i64: 1, 10>}, {transform_indices = @transform_5, window_bounds = array<i64: 16, 10>}]} {
    %c0 = arith.constant 0 : index
    %c0_0 = arith.constant 0 : index
    %0 = vector.load %arg1[%c0, %c0_0] : memref<16x784xf32, #tpu.memory_space<vmem>>, vector<16x784xf32>
    %1 = arith.truncf %0 : vector<16x784xf32> to vector<16x784xbf16>
    %c0_1 = arith.constant 0 : index
    %c0_2 = arith.constant 0 : index
    %2 = vector.load %arg2[%c0_1, %c0_2] : memref<784x128xbf16, #tpu.memory_space<vmem>>, vector<784x128xbf16>
    %cst = arith.constant dense<0.000000e+00> : vector<16x128xf32>
    %3 = tpu.matmul %1, %2, %cst {dimension_numbers = #tpu.dot_dimension_numbers<[1], [0], [0], [1], [0, 0, 1, 1], [], []>} : vector<16x784xbf16>, vector<784x128xbf16>, vector<16x128xf32> -> vector<16x128xf32>
    %c0_3 = arith.constant 0 : index
    %c0_4 = arith.constant 0 : index
    %4 = vector.load %arg3[%c0_3, %c0_4] : memref<1x128xf32, #tpu.memory_space<vmem>>, vector<1x128xf32>
    %5 = vector.broadcast %4 : vector<1x128xf32> to vector<16x128xf32>
    %6 = arith.addf %3, %5 : vector<16x128xf32>
    %cst_5 = arith.constant 0.000000e+00 : f32
    %7 = vector.broadcast %cst_5 : f32 to vector<16x128xf32>
    %8 = arith.maximumf %6, %7 : vector<16x128xf32>
    %9 = arith.truncf %8 : vector<16x128xf32> to vector<16x128xbf16>
    %c0_6 = arith.constant 0 : index
    %c0_7 = arith.constant 0 : index
    %10 = vector.load %arg4[%c0_6, %c0_7] : memref<128x10xbf16, #tpu.memory_space<vmem>>, vector<128x10xbf16>
    %cst_8 = arith.constant dense<0.000000e+00> : vector<16x10xf32>
    %11 = tpu.matmul %9, %10, %cst_8 {dimension_numbers = #tpu.dot_dimension_numbers<[1], [0], [0], [1], [0, 0, 1, 1], [], []>} : vector<16x128xbf16>, vector<128x10xbf16>, vector<16x10xf32> -> vector<16x10xf32>
    %c0_9 = arith.constant 0 : index
    %c0_10 = arith.constant 0 : index
    %12 = vector.load %arg5[%c0_9, %c0_10] : memref<1x10xf32, #tpu.memory_space<vmem>>, vector<1x10xf32>
    %13 = vector.broadcast %12 : vector<1x10xf32> to vector<16x10xf32>
    %14 = arith.addf %11, %13 : vector<16x10xf32>
    %cst_11 = arith.constant dense<0xFF800000> : vector<16xf32>
    %15 = vector.multi_reduction <maximumf>, %14, %cst_11 [1] : vector<16x10xf32> to vector<16xf32>
    %16 = vector.shape_cast %15 : vector<16xf32> to vector<16x1xf32>
    %17 = vector.broadcast %16 : vector<16x1xf32> to vector<16x10xf32>
    %18 = arith.subf %14, %17 : vector<16x10xf32>
    %19 = math.exp %18 : vector<16x10xf32>
    %cst_12 = arith.constant dense<0.000000e+00> : vector<16xf32>
    %20 = vector.multi_reduction <add>, %19, %cst_12 [1] : vector<16x10xf32> to vector<16xf32>
    %21 = vector.shape_cast %20 : vector<16xf32> to vector<16x1xf32>
    %22 = math.log %21 : vector<16x1xf32>
    %23 = vector.broadcast %22 : vector<16x1xf32> to vector<16x10xf32>
    %24 = arith.subf %18, %23 : vector<16x10xf32>
    %c0_13 = arith.constant 0 : index
    %c0_14 = arith.constant 0 : index
    %25 = vector.load %arg6[%c0_13, %c0_14] : memref<16x10xf32, #tpu.memory_space<vmem>>, vector<16x10xf32>
    tpu.vector_store %arg6[%c0_13, %c0_14], %24 {strides = array<i32>} : memref<16x10xf32, #tpu.memory_space<vmem>>, vector<16x10xf32>,
    return
  }
  func.func @transform_0(%arg0: i32) -> (i32, i32) {
    %c0_i32 = arith.constant 0 : i32
    %c0_i32_0 = arith.constant 0 : i32
    return %arg0, %c0_i32 : i32, i32
  }
  func.func @transform_1(%arg0: i32) -> (i32, i32) {
    %c0_i32 = arith.constant 0 : i32
    %c0_i32_0 = arith.constant 0 : i32
    %c0_i32_1 = arith.constant 0 : i32
    return %c0_i32, %c0_i32_0 : i32, i32
  }
  func.func @transform_2(%arg0: i32) -> (i32, i32) {
    %c0_i32 = arith.constant 0 : i32
    %c0_i32_0 = arith.constant 0 : i32
    %c0_i32_1 = arith.constant 0 : i32
    return %c0_i32, %c0_i32_0 : i32, i32
  }
  func.func @transform_3(%arg0: i32) -> (i32, i32) {
    %c0_i32 = arith.constant 0 : i32
    %c0_i32_0 = arith.constant 0 : i32
    %c0_i32_1 = arith.constant 0 : i32
    return %c0_i32, %c0_i32_0 : i32, i32
  }
  func.func @transform_4(%arg0: i32) -> (i32, i32) {
    %c0_i32 = arith.constant 0 : i32
    %c0_i32_0 = arith.constant 0 : i32
    %c0_i32_1 = arith.constant 0 : i32
    return %c0_i32, %c0_i32_0 : i32, i32
  }
  func.func @transform_5(%arg0: i32) -> (i32, i32) {
    %c0_i32 = arith.constant 0 : i32
    %c0_i32_0 = arith.constant 0 : i32
    return %arg0, %c0_i32 : i32, i32
  }
}

</mosaic_0001>

<llo_original>
// kernel: simple_mnist_net_forward.1
$region0: #{simple_mnist_net_forward.1}
  #allocation0 [shape = 'u32[]', space=smem, size = 0x4, offset = 0x4, fixed_abs, tag = 'smem constant byte address 0x4 - core index']
  #allocation1 [shape = 'u32[72,128]{1,0:T(1,128)}', space=vmem, size = 0x9000, scoped, tag = 'internal scratch']
  %s0 = inlined_call_operand.vmem [shape: f32[2,784], index: 0, kind: input, shape index: {}]
  %s1 = inlined_call_operand.hbm [shape: bf16[784,128], index: 1, kind: input, shape index: {}]
  %s2 = inlined_call_operand.vmem [shape: f32[1,128], index: 2, kind: input, shape index: {}]
  %s3 = inlined_call_operand.vmem [shape: bf16[128,10], index: 3, kind: input, shape index: {}]
  %s4 = inlined_call_operand.vmem [shape: f32[1,10], index: 4, kind: input, shape index: {}]
  %s5 = inlined_call_operand.hbm [shape: f32[2,10], index: 5, kind: output, shape index: {}]
  %s6 = sld [smem:[#allocation0]]
  $region34: #{simple_mnist_net_forward.1} parent=0
    _
  %s8 = ssub.s32 1, %s6
  %s9 = scalar_select 0, %s8, %s6
  $region1: #{simple_mnist_net_forward.1} parent=0
    #allocation2 [shape = 'u8[200704]{0}', space=vmem, size = 0x31000, scoped, tag = 'input window, operand 1, single buffered']
    #allocation3 [shape = 's32[1]{0}', space=sflag, size = 0x4, scoped, tag = 'scoped memory for simple_mnist_net_forward.1']
    #allocation4 [shape = 's32[1]{0}', space=sflag, size = 0x4, scoped, tag = 'scoped memory for simple_mnist_net_forward.1']
    #allocation5 [shape = 'u8[8192]{0}', space=vmem, size = 0x2000, scoped, tag = 'output window, operand 0, single buffered']
    %10 = vsyncpa [#allocation3], 0
    %11 = vsyncpa [#allocation4], 0
    // Predicated region
    $region2: #{simple_mnist_net_forward.1} parent=1 // pred_check
      _
    $region3: #{simple_mnist_net_forward.1} parent=1 // pred_check_branch
      %13 = sbr.rel (0) target = $region5
    $region4: #{simple_mnist_net_forward.1} parent=1 // pred_region
      _
    $region5: #{simple_mnist_net_forward.1} parent=1 // pred_fallthru
      _
    // Predicated region
    $region6: #{simple_mnist_net_forward.1} parent=1 // pred_check
      _
    $region7: #{simple_mnist_net_forward.1} parent=1 // pred_check_branch
      %15 = sbr.rel (0) target = $region9
    $region8: #{simple_mnist_net_forward.1} parent=1 // pred_region
      %17 = vsyncadd [#allocation3], 0
      %s18 = sshll.u32 %s1, 4
      %s19 = int_to_ptr.hbm [resolvable:$true] %s18
      %s20 = sshll.u32 [#allocation2], 4
      %s21 = int_to_ptr.vmem [resolvable:$true] %s20
      %26 = dma.hbm_to_vmem [thread:$0]  %s19, 6272, %s21, [#allocation3], 64, 64, 4
    $region9: #{simple_mnist_net_forward.1} parent=1 // pred_fallthru
      _
    // Predicated region
    $region10: #{simple_mnist_net_forward.1} parent=1 // pred_check
      _
    $region11: #{simple_mnist_net_forward.1} parent=1 // pred_check_branch
      %28 = sbr.rel (0) target = $region13
    $region12: #{simple_mnist_net_forward.1} parent=1 // pred_region
      _
    $region13: #{simple_mnist_net_forward.1} parent=1 // pred_fallthru
      _
    // Predicated region
    $region14: #{simple_mnist_net_forward.1} parent=1 // pred_check
      _
    $region15: #{simple_mnist_net_forward.1} parent=1 // pred_check_branch
      %30 = sbr.rel (0) target = $region17
    $region16: #{simple_mnist_net_forward.1} parent=1 // pred_region
      _
    $region17: #{simple_mnist_net_forward.1} parent=1 // pred_fallthru
      _
    // Predicated region
    $region18: #{simple_mnist_net_forward.1} parent=1 // pred_check
      _
    $region19: #{simple_mnist_net_forward.1} parent=1 // pred_check_branch
      %32 = sbr.rel (0) target = $region21
    $region20: #{simple_mnist_net_forward.1} parent=1 // pred_region
      _
    $region21: #{simple_mnist_net_forward.1} parent=1 // pred_fallthru
      _
    // Predicated region
    $region22: #{simple_mnist_net_forward.1} parent=1 // pred_check
      _
    $region23: #{simple_mnist_net_forward.1} parent=1 // pred_check_branch
      %34 = sbr.rel (0) target = $region25
    $region24: #{simple_mnist_net_forward.1} parent=1 // pred_region
      %36 = dma.done [#allocation3], 6272
    $region25: #{simple_mnist_net_forward.1} parent=1 // pred_fallthru
      _
    %v38 = vld [vmem:[%s0] sm:$0xff]
    %v39 = vld [vmem:[%s0 + $0x8] sm:$0x3f]
    %v40 = vld [vmem:[%s0 + $0xe] sm:$0xff]
    %v41 = vld [vmem:[%s0 + $0x16] sm:$0x3f]
    %v42 = vld [vmem:[%s0 + $0x1c] sm:$0xff]
    %v43 = vld [vmem:[%s0 + $0x24] sm:$0x3f]
    %v44 = vld [vmem:[%s0 + $0x2a] sm:$0xff]
    %v45 = vld [vmem:[%s0 + $0x32] sm:$0x3f]
    %v46 = vld [vmem:[%s0 + $0x38] sm:$0xff]
    %v47 = vld [vmem:[%s0 + $0x40] sm:$0x3f]
    %v48 = vld [vmem:[%s0 + $0x46] sm:$0xff]
    %v49 = vld [vmem:[%s0 + $0x4e] sm:$0x3f]
    %v50 = vld [vmem:[%s0 + $0x54] sm:$0xff]
    %v51 = vld [vmem:[%s0 + $0x5c] sm:$0x3f]
    %v52 = vld [vmem:[%s0 + $0x62] sm:$0xff]
    %v53 = vld [vmem:[%s0 + $0x6a] sm:$0x3f]
    %70 = vst [vmem:[#allocation1] ss:$4 sm:$0xff] %v38
    %s71 = scalar_lea.vmem [#allocation1], 1
    %72 = vst [vmem:[%s71] ss:$4 sm:$0xff] %v40
    %s73 = scalar_lea.vmem [#allocation1], 2
    %74 = vst [vmem:[%s73] ss:$4 sm:$0xff] %v42
    %s75 = scalar_lea.vmem [#allocation1], 3
    %76 = vst [vmem:[%s75] ss:$4 sm:$0xff] %v44
    %s77 = scalar_lea.vmem [#allocation1], 32
    %78 = vst [vmem:[%s77] ss:$4 sm:$0xff] %v39
    %s79 = scalar_lea.vmem [#allocation1], 33
    %80 = vst [vmem:[%s79] ss:$4 sm:$0xff] %v41
    %s81 = scalar_lea.vmem [#allocation1], 34
    %82 = vst [vmem:[%s81] ss:$4 sm:$0xff] %v43
    %s83 = scalar_lea.vmem [#allocation1], 35
    %84 = vst [vmem:[%s83] ss:$4 sm:$0xff] %v45
    %v85 = vld.sshfl [vmem:[#allocation1] sm:$0xff pattern:$0x73625140]
    %v86 = vld.sshfl [vmem:[#allocation1 + $0x8] sm:$0xff pattern:$0x73625140]
    %v87 = vld.sshfl [vmem:[#allocation1 + $0x10] sm:$0xff pattern:$0x73625140]
    %v88 = vld.sshfl [vmem:[#allocation1 + $0x18] sm:$0xff pattern:$0x73625140]
    %v89 = vld.sshfl [vmem:[#allocation1 + $0x20] sm:$0xff pattern:$0x73625140]
    %v90 = vld.sshfl [vmem:[#allocation1 + $0x28] sm:$0xff pattern:$0x73625140]
    %v91 = vld.sshfl [vmem:[#allocation1 + $0x30] sm:$0xff pattern:$0x73625140]
    %92 = vst [vmem:[#allocation1] ss:$4 sm:$0xff] %v46
    %93 = vst [vmem:[%s71] ss:$4 sm:$0xff] %v48
    %94 = vst [vmem:[%s73] ss:$4 sm:$0xff] %v50
    %95 = vst [vmem:[%s75] ss:$4 sm:$0xff] %v52
    %96 = vst [vmem:[%s77] ss:$4 sm:$0xff] %v47
    %97 = vst [vmem:[%s79] ss:$4 sm:$0xff] %v49
    %98 = vst [vmem:[%s81] ss:$4 sm:$0xff] %v51
    %99 = vst [vmem:[%s83] ss:$4 sm:$0xff] %v53
    %v100 = vld.sshfl [vmem:[#allocation1] sm:$0xff pattern:$0x73625140]
    %v101 = vld.sshfl [vmem:[#allocation1 + $0x8] sm:$0xff pattern:$0x73625140]
    %v102 = vld.sshfl [vmem:[#allocation1 + $0x10] sm:$0xff pattern:$0x73625140]
    %v103 = vld.sshfl [vmem:[#allocation1 + $0x18] sm:$0xff pattern:$0x73625140]
    %v104 = vld.sshfl [vmem:[#allocation1 + $0x20] sm:$0xff pattern:$0x73625140]
    %v105 = vld.sshfl [vmem:[#allocation1 + $0x28] sm:$0xff pattern:$0x73625140]
    %v106 = vld.sshfl [vmem:[#allocation1 + $0x30] sm:$0xff pattern:$0x73625140]
    %v121 = vpack.c.bf16 %v100, %v85
    %v122 = vpack.c.bf16 %v101, %v86
    %v123 = vpack.c.bf16 %v102, %v87
    %v124 = vpack.c.bf16 %v103, %v88
    %v125 = vpack.c.bf16 %v104, %v89
    %v126 = vpack.c.bf16 %v105, %v90
    %v127 = vpack.c.bf16 %v106, %v91
    %v128 = vld [vmem:[#allocation2] sm:$0xf]
    %v129 = vld [vmem:[#allocation2 + $0x4] sm:$0xf]
    %v130 = vld [vmem:[#allocation2 + $0x8] sm:$0xf]
    %v131 = vld [vmem:[#allocation2 + $0xc] sm:$0xf]
    %v132 = vld [vmem:[#allocation2 + $0x10] sm:$0xf]
    %v133 = vld [vmem:[#allocation2 + $0x14] sm:$0xf]
    %v134 = vld [vmem:[#allocation2 + $0x18] sm:$0xf]
    %v135 = vld [vmem:[#allocation2 + $0x1c] sm:$0xf]
    %v136 = vld [vmem:[#allocation2 + $0x20] sm:$0xf]
    %v137 = vld [vmem:[#allocation2 + $0x24] sm:$0xf]
    %v138 = vld [vmem:[#allocation2 + $0x28] sm:$0xf]
    %v139 = vld [vmem:[#allocation2 + $0x2c] sm:$0xf]
    %v140 = vld [vmem:[#allocation2 + $0x30] sm:$0xf]
    %v141 = vld [vmem:[#allocation2 + $0x34] sm:$0xf]
    %v142 = vld [vmem:[#allocation2 + $0x38] sm:$0xf]
    %v143 = vld [vmem:[#allocation2 + $0x3c] sm:$0xf]
    %v144 = vld [vmem:[#allocation2 + $0x40] sm:$0xf]
    %v145 = vld [vmem:[#allocation2 + $0x44] sm:$0xf]
    %v146 = vld [vmem:[#allocation2 + $0x48] sm:$0xf]
    %v147 = vld [vmem:[#allocation2 + $0x4c] sm:$0xf]
    %v148 = vld [vmem:[#allocation2 + $0x50] sm:$0xf]
    %v149 = vld [vmem:[#allocation2 + $0x54] sm:$0xf]
    %v150 = vld [vmem:[#allocation2 + $0x58] sm:$0xf]
    %v151 = vld [vmem:[#allocation2 + $0x5c] sm:$0xf]
    %v152 = vld [vmem:[#allocation2 + $0x60] sm:$0xf]
    %v153 = vld [vmem:[#allocation2 + $0x64] sm:$0xf]
    %v154 = vld [vmem:[#allocation2 + $0x68] sm:$0xf]
    %v155 = vld [vmem:[#allocation2 + $0x6c] sm:$0xf]
    %v156 = vld [vmem:[#allocation2 + $0x70] sm:$0xf]
    %v157 = vld [vmem:[#allocation2 + $0x74] sm:$0xf]
    %v158 = vld [vmem:[#allocation2 + $0x78] sm:$0xf]
    %v159 = vld [vmem:[#allocation2 + $0x7c] sm:$0xf]
    %v160 = vld [vmem:[#allocation2 + $0x80] sm:$0xf]
    %v161 = vld [vmem:[#allocation2 + $0x84] sm:$0xf]
    %v162 = vld [vmem:[#allocation2 + $0x88] sm:$0xf]
    %v163 = vld [vmem:[#allocation2 + $0x8c] sm:$0xf]
    %v164 = vld [vmem:[#allocation2 + $0x90] sm:$0xf]
    %v165 = vld [vmem:[#allocation2 + $0x94] sm:$0xf]
    %v166 = vld [vmem:[#allocation2 + $0x98] sm:$0xf]
    %v167 = vld [vmem:[#allocation2 + $0x9c] sm:$0xf]
    %v168 = vld [vmem:[#allocation2 + $0xa0] sm:$0xf]
    %v169 = vld [vmem:[#allocation2 + $0xa4] sm:$0xf]
    %v170 = vld [vmem:[#allocation2 + $0xa8] sm:$0xf]
    %v171 = vld [vmem:[#allocation2 + $0xac] sm:$0xf]
    %v172 = vld [vmem:[#allocation2 + $0xb0] sm:$0xf]
    %v173 = vld [vmem:[#allocation2 + $0xb4] sm:$0xf]
    %v174 = vld [vmem:[#allocation2 + $0xb8] sm:$0xf]
    %v175 = vld [vmem:[#allocation2 + $0xbc] sm:$0xf]
    %v176 = vld [vmem:[#allocation2 + $0xc0] sm:$0xf]
    %v177 = vld [vmem:[#allocation2 + $0xc4] sm:$0xf]
    %v178 = vld [vmem:[#allocation2 + $0xc8] sm:$0xf]
    %v179 = vld [vmem:[#allocation2 + $0xcc] sm:$0xf]
    %v180 = vld [vmem:[#allocation2 + $0xd0] sm:$0xf]
    %v181 = vld [vmem:[#allocation2 + $0xd4] sm:$0xf]
    %v182 = vld [vmem:[#allocation2 + $0xd8] sm:$0xf]
    %v183 = vld [vmem:[#allocation2 + $0xdc] sm:$0xf]
    %v184 = vld [vmem:[#allocation2 + $0xe0] sm:$0xf]
    %v185 = vld [vmem:[#allocation2 + $0xe4] sm:$0xf]
    %v186 = vld [vmem:[#allocation2 + $0xe8] sm:$0xf]
    %v187 = vld [vmem:[#allocation2 + $0xec] sm:$0xf]
    %v188 = vld [vmem:[#allocation2 + $0xf0] sm:$0xf]
    %v189 = vld [vmem:[#allocation2 + $0xf4] sm:$0xf]
    %v190 = vld [vmem:[#allocation2 + $0xf8] sm:$0xf]
    %v191 = vld [vmem:[#allocation2 + $0xfc] sm:$0xf]
    %v192 = vld [vmem:[#allocation2 + $0x100] sm:$0xf]
    %v193 = vld [vmem:[#allocation2 + $0x104] sm:$0xf]
    %v194 = vld [vmem:[#allocation2 + $0x108] sm:$0xf]
    %v195 = vld [vmem:[#allocation2 + $0x10c] sm:$0xf]
    %v196 = vld [vmem:[#allocation2 + $0x110] sm:$0xf]
    %v197 = vld [vmem:[#allocation2 + $0x114] sm:$0xf]
    %v198 = vld [vmem:[#allocation2 + $0x118] sm:$0xf]
    %v199 = vld [vmem:[#allocation2 + $0x11c] sm:$0xf]
    %v200 = vld [vmem:[#allocation2 + $0x120] sm:$0xf]
    %v201 = vld [vmem:[#allocation2 + $0x124] sm:$0xf]
    %v202 = vld [vmem:[#allocation2 + $0x128] sm:$0xf]
    %v203 = vld [vmem:[#allocation2 + $0x12c] sm:$0xf]
    %v204 = vld [vmem:[#allocation2 + $0x130] sm:$0xf]
    %v205 = vld [vmem:[#allocation2 + $0x134] sm:$0xf]
    %v206 = vld [vmem:[#allocation2 + $0x138] sm:$0xf]
    %v207 = vld [vmem:[#allocation2 + $0x13c] sm:$0xf]
    %v208 = vld [vmem:[#allocation2 + $0x140] sm:$0xf]
    %v209 = vld [vmem:[#allocation2 + $0x144] sm:$0xf]
    %v210 = vld [vmem:[#allocation2 + $0x148] sm:$0xf]
    %v211 = vld [vmem:[#allocation2 + $0x14c] sm:$0xf]
    %v212 = vld [vmem:[#allocation2 + $0x150] sm:$0xf]
    %v213 = vld [vmem:[#allocation2 + $0x154] sm:$0xf]
    %v214 = vld [vmem:[#allocation2 + $0x158] sm:$0xf]
    %v215 = vld [vmem:[#allocation2 + $0x15c] sm:$0xf]
    %v216 = vld [vmem:[#allocation2 + $0x160] sm:$0xf]
    %v217 = vld [vmem:[#allocation2 + $0x164] sm:$0xf]
    %v218 = vld [vmem:[#allocation2 + $0x168] sm:$0xf]
    %v219 = vld [vmem:[#allocation2 + $0x16c] sm:$0xf]
    %v220 = vld [vmem:[#allocation2 + $0x170] sm:$0xf]
    %v221 = vld [vmem:[#allocation2 + $0x174] sm:$0xf]
    %v222 = vld [vmem:[#allocation2 + $0x178] sm:$0xf]
    %v223 = vld [vmem:[#allocation2 + $0x17c] sm:$0xf]
    %v224 = vld [vmem:[#allocation2 + $0x180] sm:$0xf]
    %v225 = vld [vmem:[#allocation2 + $0x184] sm:$0xf]
    %v226 = vld [vmem:[%s2] sm:$0x1]
    %v228 = vperm.slane %v226, 0
    %v328 = vunpack.c.l.b16 %v128
    %v329 = vunpack.c.l.b16 %v129
    %v330 = vunpack.c.l.b16 %v130
    %v331 = vunpack.c.l.b16 %v131
    %v332 = vunpack.c.l.b16 %v132
    %v333 = vunpack.c.l.b16 %v133
    %v334 = vunpack.c.l.b16 %v134
    %v335 = vunpack.c.l.b16 %v135
    %v336 = vunpack.c.l.b16 %v136
    %v337 = vunpack.c.l.b16 %v137
    %v338 = vunpack.c.l.b16 %v138
    %v339 = vunpack.c.l.b16 %v139
    %v340 = vunpack.c.l.b16 %v140
    %v341 = vunpack.c.l.b16 %v141
    %v342 = vunpack.c.l.b16 %v142
    %v343 = vunpack.c.l.b16 %v143
    %v344 = vunpack.c.l.b16 %v144
    %v345 = vunpack.c.l.b16 %v145
    %v346 = vunpack.c.l.b16 %v146
    %v347 = vunpack.c.l.b16 %v147
    %v348 = vunpack.c.l.b16 %v148
    %v349 = vunpack.c.l.b16 %v149
    %v350 = vunpack.c.l.b16 %v150
    %v351 = vunpack.c.l.b16 %v151
    %v352 = vunpack.c.l.b16 %v152
    %v353 = vunpack.c.l.b16 %v153
    %v354 = vunpack.c.l.b16 %v154
    %v355 = vunpack.c.l.b16 %v155
    %v356 = vunpack.c.l.b16 %v156
    %v357 = vunpack.c.l.b16 %v157
    %v358 = vunpack.c.l.b16 %v158
    %v359 = vunpack.c.l.b16 %v159
    %v360 = vunpack.c.l.b16 %v160
    %v361 = vunpack.c.l.b16 %v161
    %v362 = vunpack.c.l.b16 %v162
    %v363 = vunpack.c.l.b16 %v163
    %v364 = vunpack.c.l.b16 %v164
    %v365 = vunpack.c.l.b16 %v165
    %v366 = vunpack.c.l.b16 %v166
    %v367 = vunpack.c.l.b16 %v167
    %v368 = vunpack.c.l.b16 %v168
    %v369 = vunpack.c.l.b16 %v169
    %v370 = vunpack.c.l.b16 %v170
    %v371 = vunpack.c.l.b16 %v171
    %v372 = vunpack.c.l.b16 %v172
    %v373 = vunpack.c.l.b16 %v173
    %v374 = vunpack.c.l.b16 %v174
    %v375 = vunpack.c.l.b16 %v175
    %v376 = vunpack.c.l.b16 %v176
    %v377 = vunpack.c.l.b16 %v177
    %v378 = vunpack.c.l.b16 %v178
    %v379 = vunpack.c.l.b16 %v179
    %v380 = vunpack.c.l.b16 %v180
    %v381 = vunpack.c.l.b16 %v181
    %v382 = vunpack.c.l.b16 %v182
    %v383 = vunpack.c.l.b16 %v183
    %v384 = vunpack.c.l.b16 %v184
    %v385 = vunpack.c.l.b16 %v185
    %v386 = vunpack.c.l.b16 %v186
    %v387 = vunpack.c.l.b16 %v187
    %v388 = vunpack.c.l.b16 %v188
    %v389 = vunpack.c.l.b16 %v189
    %v390 = vunpack.c.l.b16 %v190
    %v391 = vunpack.c.l.b16 %v191
    %v392 = vunpack.c.l.b16 %v192
    %v393 = vunpack.c.l.b16 %v193
    %v394 = vunpack.c.l.b16 %v194
    %v395 = vunpack.c.l.b16 %v195
    %v396 = vunpack.c.l.b16 %v196
    %v397 = vunpack.c.l.b16 %v197
    %v398 = vunpack.c.l.b16 %v198
    %v399 = vunpack.c.l.b16 %v199
    %v400 = vunpack.c.l.b16 %v200
    %v401 = vunpack.c.l.b16 %v201
    %v402 = vunpack.c.l.b16 %v202
    %v403 = vunpack.c.l.b16 %v203
    %v404 = vunpack.c.l.b16 %v204
    %v405 = vunpack.c.l.b16 %v205
    %v406 = vunpack.c.l.b16 %v206
    %v407 = vunpack.c.l.b16 %v207
    %v408 = vunpack.c.l.b16 %v208
    %v409 = vunpack.c.l.b16 %v209
    %v410 = vunpack.c.l.b16 %v210
    %v411 = vunpack.c.l.b16 %v211
    %v412 = vunpack.c.l.b16 %v212
    %v413 = vunpack.c.l.b16 %v213
    %v414 = vunpack.c.l.b16 %v214
    %v415 = vunpack.c.l.b16 %v215
    %v416 = vunpack.c.l.b16 %v216
    %v417 = vunpack.c.l.b16 %v217
    %v418 = vunpack.c.l.b16 %v218
    %v419 = vunpack.c.l.b16 %v219
    %v420 = vunpack.c.l.b16 %v220
    %v421 = vunpack.c.l.b16 %v221
    %v422 = vunpack.c.l.b16 %v222
    %v423 = vunpack.c.l.b16 %v223
    %v424 = vunpack.c.l.b16 %v224
    %v425 = vunpack.c.l.b16 %v225
    %v426 = vpack.c.b16 %v329, %v328
    %v427 = vpack.c.b16 %v331, %v330
    %v428 = vpack.c.b16 %v333, %v332
    %v429 = vpack.c.b16 %v335, %v334
    %v430 = vpack.c.b16 %v337, %v336
    %v431 = vpack.c.b16 %v339, %v338
    %v432 = vpack.c.b16 %v341, %v340
    %v433 = vpack.c.b16 %v343, %v342
    %v434 = vpack.c.b16 %v345, %v344
    %v435 = vpack.c.b16 %v347, %v346
    %v436 = vpack.c.b16 %v349, %v348
    %v437 = vpack.c.b16 %v351, %v350
    %v438 = vpack.c.b16 %v353, %v352
    %v439 = vpack.c.b16 %v355, %v354
    %v440 = vpack.c.b16 %v357, %v356
    %v441 = vpack.c.b16 %v359, %v358
    %v442 = vpack.c.b16 %v361, %v360
    %v443 = vpack.c.b16 %v363, %v362
    %v444 = vpack.c.b16 %v365, %v364
    %v445 = vpack.c.b16 %v367, %v366
    %v446 = vpack.c.b16 %v369, %v368
    %v447 = vpack.c.b16 %v371, %v370
    %v448 = vpack.c.b16 %v373, %v372
    %v449 = vpack.c.b16 %v375, %v374
    %v450 = vpack.c.b16 %v377, %v376
    %v451 = vpack.c.b16 %v379, %v378
    %v452 = vpack.c.b16 %v381, %v380
    %v453 = vpack.c.b16 %v383, %v382
    %v454 = vpack.c.b16 %v385, %v384
    %v455 = vpack.c.b16 %v387, %v386
    %v456 = vpack.c.b16 %v389, %v388
    %v457 = vpack.c.b16 %v391, %v390
    %v458 = vpack.c.b16 %v393, %v392
    %v459 = vpack.c.b16 %v395, %v394
    %v460 = vpack.c.b16 %v397, %v396
    %v461 = vpack.c.b16 %v399, %v398
    %v462 = vpack.c.b16 %v401, %v400
    %v463 = vpack.c.b16 %v403, %v402
    %v464 = vpack.c.b16 %v405, %v404
    %v465 = vpack.c.b16 %v407, %v406
    %v466 = vpack.c.b16 %v409, %v408
    %v467 = vpack.c.b16 %v411, %v410
    %v468 = vpack.c.b16 %v413, %v412
    %v469 = vpack.c.b16 %v415, %v414
    %v470 = vpack.c.b16 %v417, %v416
    %v471 = vpack.c.b16 %v419, %v418
    %v472 = vpack.c.b16 %v421, %v420
    %v473 = vpack.c.b16 %v423, %v422
    %v474 = vpack.c.b16 %v425, %v424
    %vm524 = vcmask 130048
    %v526 = vsel %vm524, %v127, 0
    %528 = vmatpush.bf16.msra.mxu0 %v433
    %529 = vmatpush.bf16.msra.mxu0 %v432
    %530 = vmatpush.bf16.msra.mxu0 %v431
    %531 = vmatpush.bf16.msra.mxu0 %v430
    %532 = vmatpush.bf16.msra.mxu0 %v429
    %533 = vmatpush.bf16.msra.mxu0 %v428
    %534 = vmatpush.bf16.msra.mxu0 %v427
    %535 = vmatpush.bf16.msra.mxu0 %v426
    %536 = vmatmul.bf16.gmra.mxu0 %v121
    %v537 = vpop.f32.mrf.mxu0
    %v538 = vadd.f32 %v228, %v537
    %v539 = vpop.f32.mrf.mxu0
    %v540 = vadd.f32 %v228, %v539
    %541 = vdwg.mxu0
    %542 = vmatpush.bf16.msra.mxu0 %v441
    %543 = vmatpush.bf16.msra.mxu0 %v440
    %544 = vmatpush.bf16.msra.mxu0 %v439
    %545 = vmatpush.bf16.msra.mxu0 %v438
    %546 = vmatpush.bf16.msra.mxu0 %v437
    %547 = vmatpush.bf16.msra.mxu0 %v436
    %548 = vmatpush.bf16.msra.mxu0 %v435
    %549 = vmatpush.bf16.msra.mxu0 %v434
    %550 = vmatmul.bf16.gmra.mxu0 %v122
    %v551 = vpop.f32.mrf.mxu0
    %v552 = vadd.f32 %v538, %v551
    %v553 = vpop.f32.mrf.mxu0
    %v554 = vadd.f32 %v540, %v553
    %555 = vdwg.mxu0
    %556 = vmatpush.bf16.msra.mxu0 %v449
    %557 = vmatpush.bf16.msra.mxu0 %v448
    %558 = vmatpush.bf16.msra.mxu0 %v447
    %559 = vmatpush.bf16.msra.mxu0 %v446
    %560 = vmatpush.bf16.msra.mxu0 %v445
    %561 = vmatpush.bf16.msra.mxu0 %v444
    %562 = vmatpush.bf16.msra.mxu0 %v443
    %563 = vmatpush.bf16.msra.mxu0 %v442
    %564 = vmatmul.bf16.gmra.mxu0 %v123
    %v565 = vpop.f32.mrf.mxu0
    %v566 = vadd.f32 %v552, %v565
    %v567 = vpop.f32.mrf.mxu0
    %v568 = vadd.f32 %v554, %v567
    %569 = vdwg.mxu0
    %570 = vmatpush.bf16.msra.mxu0 %v457
    %571 = vmatpush.bf16.msra.mxu0 %v456
    %572 = vmatpush.bf16.msra.mxu0 %v455
    %573 = vmatpush.bf16.msra.mxu0 %v454
    %574 = vmatpush.bf16.msra.mxu0 %v453
    %575 = vmatpush.bf16.msra.mxu0 %v452
    %576 = vmatpush.bf16.msra.mxu0 %v451
    %577 = vmatpush.bf16.msra.mxu0 %v450
    %578 = vmatmul.bf16.gmra.mxu0 %v124
    %v579 = vpop.f32.mrf.mxu0
    %v580 = vadd.f32 %v566, %v579
    %v581 = vpop.f32.mrf.mxu0
    %v582 = vadd.f32 %v568, %v581
    %583 = vdwg.mxu0
    %584 = vmatpush.bf16.msra.mxu0 %v465
    %585 = vmatpush.bf16.msra.mxu0 %v464
    %586 = vmatpush.bf16.msra.mxu0 %v463
    %587 = vmatpush.bf16.msra.mxu0 %v462
    %588 = vmatpush.bf16.msra.mxu0 %v461
    %589 = vmatpush.bf16.msra.mxu0 %v460
    %590 = vmatpush.bf16.msra.mxu0 %v459
    %591 = vmatpush.bf16.msra.mxu0 %v458
    %592 = vmatmul.bf16.gmra.mxu0 %v125
    %v593 = vpop.f32.mrf.mxu0
    %v594 = vadd.f32 %v580, %v593
    %v595 = vpop.f32.mrf.mxu0
    %v596 = vadd.f32 %v582, %v595
    %597 = vdwg.mxu0
    %598 = vmatpush.bf16.msra.mxu0 %v473
    %599 = vmatpush.bf16.msra.mxu0 %v472
    %600 = vmatpush.bf16.msra.mxu0 %v471
    %601 = vmatpush.bf16.msra.mxu0 %v470
    %602 = vmatpush.bf16.msra.mxu0 %v469
    %603 = vmatpush.bf16.msra.mxu0 %v468
    %604 = vmatpush.bf16.msra.mxu0 %v467
    %605 = vmatpush.bf16.msra.mxu0 %v466
    %606 = vmatmul.bf16.gmra.mxu0 %v126
    %v607 = vpop.f32.mrf.mxu0
    %v608 = vadd.f32 %v594, %v607
    %v609 = vpop.f32.mrf.mxu0
    %v610 = vadd.f32 %v596, %v609
    %611 = vdwg.mxu0
    %612 = vmatpush.bf16.msra.mxu0 0
    %613 = vmatpush.bf16.msra.mxu0 0
    %614 = vmatpush.bf16.msra.mxu0 0
    %615 = vmatpush.bf16.msra.mxu0 0
    %616 = vmatpush.bf16.msra.mxu0 0
    %617 = vmatpush.bf16.msra.mxu0 0
    %618 = vmatpush.bf16.msra.mxu0 0
    %619 = vmatpush.bf16.msra.mxu0 %v474
    %620 = vmatmul.bf16.gmra.mxu0 %v526
    %v621 = vpop.f32.mrf.mxu0
    %v622 = vadd.f32 %v608, %v621
    %v623 = vpop.f32.mrf.mxu0
    %v624 = vadd.f32 %v610, %v623
    %625 = vdwg.mxu0
    %v626 = vmax.f32 %v622, 0.0
    %v627 = vmax.f32 %v624, 0.0
    %v628 = vpack.c.bf16 %v627, %v626
    %v629 = vld [vmem:[%s3] sm:$0xf]
    %v630 = vld [vmem:[%s3 + $0x4] sm:$0xf]
    %v631 = vld [vmem:[%s3 + $0x8] sm:$0xf]
    %v632 = vld [vmem:[%s3 + $0xc] sm:$0xf]
    %v633 = vld [vmem:[%s3 + $0x10] sm:$0xf]
    %v634 = vld [vmem:[%s3 + $0x14] sm:$0xf]
    %v635 = vld [vmem:[%s3 + $0x18] sm:$0xf]
    %v636 = vld [vmem:[%s3 + $0x1c] sm:$0xf]
    %v637 = vld [vmem:[%s3 + $0x20] sm:$0xf]
    %v638 = vld [vmem:[%s3 + $0x24] sm:$0xf]
    %v639 = vld [vmem:[%s3 + $0x28] sm:$0xf]
    %v640 = vld [vmem:[%s3 + $0x2c] sm:$0xf]
    %v641 = vld [vmem:[%s3 + $0x30] sm:$0xf]
    %v642 = vld [vmem:[%s3 + $0x34] sm:$0xf]
    %v643 = vld [vmem:[%s3 + $0x38] sm:$0xf]
    %v644 = vld [vmem:[%s3 + $0x3c] sm:$0xf]
    %v645 = vld [vmem:[%s4] sm:$0x1]
    %v647 = vperm.slane %v645, 0
    %v665 = vunpack.c.l.b16 %v629
    %v666 = vunpack.c.l.b16 %v630
    %v667 = vunpack.c.l.b16 %v631
    %v668 = vunpack.c.l.b16 %v632
    %v669 = vunpack.c.l.b16 %v633
    %v670 = vunpack.c.l.b16 %v634
    %v671 = vunpack.c.l.b16 %v635
    %v672 = vunpack.c.l.b16 %v636
    %v673 = vunpack.c.l.b16 %v637
    %v674 = vunpack.c.l.b16 %v638
    %v675 = vunpack.c.l.b16 %v639
    %v676 = vunpack.c.l.b16 %v640
    %v677 = vunpack.c.l.b16 %v641
    %v678 = vunpack.c.l.b16 %v642
    %v679 = vunpack.c.l.b16 %v643
    %v680 = vunpack.c.l.b16 %v644
    %v681 = vpack.c.b16 %v666, %v665
    %v682 = vpack.c.b16 %v668, %v667
    %v683 = vpack.c.b16 %v670, %v669
    %v684 = vpack.c.b16 %v672, %v671
    %v685 = vpack.c.b16 %v674, %v673
    %v686 = vpack.c.b16 %v676, %v675
    %v687 = vpack.c.b16 %v678, %v677
    %v688 = vpack.c.b16 %v680, %v679
    %697 = vmatpush.bf16.msra.mxu0 %v688
    %698 = vmatpush.bf16.msra.mxu0 %v687
    %699 = vmatpush.bf16.msra.mxu0 %v686
    %700 = vmatpush.bf16.msra.mxu0 %v685
    %701 = vmatpush.bf16.msra.mxu0 %v684
    %702 = vmatpush.bf16.msra.mxu0 %v683
    %703 = vmatpush.bf16.msra.mxu0 %v682
    %704 = vmatpush.bf16.msra.mxu0 %v681
    %705 = vmatmul.bf16.gmra.mxu0 %v628
    %v706 = vpop.f32.mrf.mxu0
    %v707 = vadd.f32 %v647, %v706
    %v708 = vpop.f32.mrf.mxu0
    %v709 = vadd.f32 %v647, %v708
    %710 = vdwg.mxu0
    %vm711 = vcmask 80896
    %v712 = vsel %vm711, %v707, -inf
    %713 = vmax.xlane.f32.xlu0 %v712
    %v714 = vpop.xlane.xlu0 %713
    %v715 = vsel %vm711, %v709, -inf
    %716 = vmax.xlane.f32.xlu0 %v715
    %v717 = vpop.xlane.xlu0 %716
    %v718 = vsub.f32 %v707, %v714
    %v719 = vsub.f32 %v709, %v717
    %v720 = vmul.f32 %v718, 1.442695
    %v721 = vpow.pop %v720
    %v722 = vmul.f32 %v719, 1.442695
    %v723 = vpow.pop %v722
    %v724 = vsel %vm711, %v721, 0.0
    %725 = vadd.xlane.f32.xlu0 %v724
    %v726 = vpop.xlane.xlu0 %725
    %v727 = vsel %vm711, %v723, 0.0
    %728 = vadd.xlane.f32.xlu0 %v727
    %v729 = vpop.xlane.xlu0 %728
    %v730 = vlog2.pop %v726
    %v731 = vmul.f32 %v730, 0.6931472
    %v732 = vlog2.pop %v729
    %v733 = vmul.f32 %v732, 0.6931472
    %v734 = vsub.f32 %v718, %v731
    %v735 = vsub.f32 %v719, %v733
    %736 = vst.msk [vmem:[#allocation5] sm:$0xff] %vm711, %v734
    %737 = vst.msk [vmem:[#allocation5 + $0x8] sm:$0xff] %vm711, %v735
    // Predicated region
    $region26: #{simple_mnist_net_forward.1} parent=1 // pred_check
      _
    $region27: #{simple_mnist_net_forward.1} parent=1 // pred_check_branch
      %739 = sbr.rel (0) target = $region29
    $region28: #{simple_mnist_net_forward.1} parent=1 // pred_region
      %741 = vsyncadd [#allocation4], 224
      %s742 = sshll.u32 [#allocation5], 4
      %s743 = int_to_ptr.vmem [resolvable:$true] %s742
      %s744 = sshll.u32 %s5, 4
      %s745 = int_to_ptr.hbm [resolvable:$true] %s744
      %750 = dma.vmem_to_hbm [thread:$0]  %s743, 32, %s745, [#allocation4], 32, 32, 2
    $region29: #{simple_mnist_net_forward.1} parent=1 // pred_fallthru
      _
    // Predicated region
    $region30: #{simple_mnist_net_forward.1} parent=1 // pred_check
      _
    $region31: #{simple_mnist_net_forward.1} parent=1 // pred_check_branch
      %752 = sbr.rel (0) target = $region33
    $region32: #{simple_mnist_net_forward.1} parent=1 // pred_region
      %754 = dma.done [#allocation4], 256
    $region33: #{simple_mnist_net_forward.1} parent=1 // pred_fallthru
      _
    %755 = vsyncpa [#allocation3], 1
    %756 = vsyncpa [#allocation4], 1

</llo_original>
